<compile_context>
chip_gen: v7x
topology: tpu7x:2x2x1
jax: 0.10.0
libtpu: 0.0.40
codegen_flags: <defaults>
</compile_context>

<pallas_src>
import functools

import jax
import jax.numpy as jnp
from jax import lax
from jax.experimental import pallas as pl
from jax.experimental.pallas import tpu as pltpu


# ----------------------------------------------------------------------------
# helpers
# ----------------------------------------------------------------------------
def _round_up(x, m):
    return ((x + m - 1) // m) * m


def _vmem_capacity_bytes():
    try:
        return int(pltpu.get_tpu_info().vmem_capacity_bytes)
    except Exception:
        return 64 * 1024 * 1024  # conservative default (v7x per-core VMEM)


def _sigmoid(v):
    return 1.0 / (1.0 + jnp.exp(-v))


# ----------------------------------------------------------------------------
# Kernel A: fully fused single pass (per-batch-element feature map resident).
# ----------------------------------------------------------------------------
def _se_fused_kernel(x_ref, w1_ref, b1_ref, w2_ref, b2_ref, o_ref, acc_ref,
                     *, hw, inv_hw):
    n_full = hw // 128
    tail = hw - n_full * 128

    if n_full >= 1:
        # Lane-wise partial sums (VPU adds); one XLU reduce at the end.
        acc_ref[...] = jnp.zeros_like(acc_ref)

        def body(i, carry):
            start = pl.multiple_of(i * 128, 128)
            acc_ref[...] += x_ref[:, :, pl.ds(start, 128)].astype(jnp.float32)
            return carry

        lax.fori_loop(0, n_full, body, 0, unroll=(n_full <= 16))
        pooled = jnp.sum(acc_ref[...], axis=-1)                     # (1, C)
        if tail:
            pooled = pooled + jnp.sum(
                x_ref[:, :, n_full * 128:hw].astype(jnp.float32), axis=-1)
    else:
        pooled = jnp.sum(x_ref[...].astype(jnp.float32), axis=-1)
    pooled = pooled * inv_hw

    # Tiny MLP epilogue (off the critical path — executed once per block).
    h = jnp.dot(pooled, w1_ref[...],
                preferred_element_type=jnp.float32) + b1_ref[...]
    h = jnp.maximum(h, 0.0)
    s = jnp.dot(h, w2_ref[...],
                preferred_element_type=jnp.float32) + b2_ref[...]
    s = _sigmoid(s)                                                 # (1, C)

    o_ref[...] = (x_ref[...].astype(jnp.float32) * s[:, :, None]).astype(o_ref.dtype)


# ----------------------------------------------------------------------------
# Kernel B1 (two-pass path): tiled pooling over HW + fused SE MLP epilogue.
# ----------------------------------------------------------------------------
def _se_pool_mlp_kernel(x_ref, w1_ref, b1_ref, w2_ref, b2_ref, y_ref, acc_ref,
                        *, hw, thw, inv_hw, needs_mask):
    m = pl.program_id(1)

    @pl.when(m == 0)
    def _init():
        acc_ref[...] = jnp.zeros_like(acc_ref)

    n_full = thw // 128
    tail = thw - n_full * 128          # only non-zero when thw == hw (single tile)

    if n_full > 0:
        if needs_mask:
            lane = lax.broadcasted_iota(jnp.int32, acc_ref.shape, 2)
        base = m * thw

        def body(i, carry):
            start = pl.multiple_of(i * 128, 128)
            chunk = x_ref[:, :, pl.ds(start, 128)].astype(jnp.float32)
            if needs_mask:
                # global position = base + start + lane; zero out the padded
                # region of the last (partial) grid block.
                chunk = jnp.where(lane < (hw - base - start), chunk, 0.0)
            acc_ref[...] += chunk
            return carry

        lax.fori_loop(0, n_full, body, 0, unroll=(n_full <= 16))

    if tail > 0:
        # Static in-bounds tail slice (block width == full HW here).
        acc_ref[:, :, 0:tail] += x_ref[:, :, n_full * 128:thw].astype(jnp.float32)

    @pl.when(m == pl.num_programs(1) - 1)
    def _finalize():
        pooled = jnp.sum(acc_ref[...], axis=-1) * inv_hw            # (1, C)
        h = jnp.dot(pooled, w1_ref[...],
                    preferred_element_type=jnp.float32) + b1_ref[...]
        h = jnp.maximum(h, 0.0)
        s = jnp.dot(h, w2_ref[...],
                    preferred_element_type=jnp.float32) + b2_ref[...]
        y_ref[...] = _sigmoid(s)[:, :, None]                        # (1, C, 1)


# ----------------------------------------------------------------------------
# Kernel B2 (two-pass path): per-channel rescale, fully parallel.
# ----------------------------------------------------------------------------
def _se_scale_kernel(x_ref, y_ref, o_ref):
    o_ref[...] = (x_ref[...].astype(jnp.float32) * y_ref[...]).astype(o_ref.dtype)


# ----------------------------------------------------------------------------
# Wrapper
# ----------------------------------------------------------------------------
@functools.partial(jax.jit, static_argnames=("force_two_pass", "max_tile_elems"))
def se_layer(x_nchw, w1, b1, w2, b2, *, force_two_pass=False, max_tile_elems=None):
    """SELayer forward.  x_nchw: (B, C, H, W), returns same shape & dtype."""
    B, C, H, W = x_nchw.shape
    HW = H * W
    hidden = w1.shape[1]
    in_dtype = x_nchw.dtype
    isz = in_dtype.itemsize
    inv_hw = 1.0 / float(HW)

    # (B, C, HW) view: spatial axis on the 128-lane dimension (lane-dense).
    x = x_nchw.reshape(B, C, HW)
    w1f = w1.astype(jnp.float32)
    b1f = b1.reshape(1, hidden).astype(jnp.float32)
    w2f = w2.astype(jnp.float32)
    b2f = b2.reshape(1, C).astype(jnp.float32)

    # Per-generation VMEM budgeting (v7x 64 MiB, v5e/v6e 128 MiB physical).
    vmem_cap = _vmem_capacity_bytes()
    vmem_limit = min(int(vmem_cap * 0.75), 100 * 1024 * 1024)
    block_budget = vmem_limit // 2
    weight_bytes = 4 * (C * hidden + hidden + hidden * C + C)

    # ---- Path A: fully fused single pass (x read from HBM exactly once) -----
    # Live bytes per grid step: x + out double-buffered (+ f32 temps + acc + weights).
    fused_bytes = C * HW * (4 * isz + 8) + C * 128 * 4 + 2 * weight_bytes
    if (not force_two_pass) and fused_bytes <= block_budget:
        out = pl.pallas_call(
            functools.partial(_se_fused_kernel, hw=HW, inv_hw=inv_hw),
            out_shape=jax.ShapeDtypeStruct((B, C, HW), in_dtype),
            grid=(B,),
            in_specs=[
                pl.BlockSpec((1, C, HW), lambda b: (b, 0, 0)),
                pl.BlockSpec((C, hidden), lambda b: (0, 0)),
                pl.BlockSpec((1, hidden), lambda b: (0, 0)),
                pl.BlockSpec((hidden, C), lambda b: (0, 0)),
                pl.BlockSpec((1, C), lambda b: (0, 0)),
            ],
            out_specs=pl.BlockSpec((1, C, HW), lambda b: (b, 0, 0)),
            scratch_shapes=[pltpu.VMEM((1, C, 128), jnp.float32)],
            compiler_params=pltpu.CompilerParams(
                dimension_semantics=("parallel",),
                vmem_limit_bytes=vmem_limit),
        )(x, w1f, b1f, w2f, b2f)
        return out.reshape(B, C, H, W)

    # ---- Path B: two-pass tiled path -----------------------------------------
    # HW tile sized so kernel 2 (x + out, both double-buffered) stays well
    # within the scoped-VMEM budget; kept in the ~0.5-4 MiB-per-buffer range.
    if max_tile_elems is not None:
        thw_budget = max(128, (max_tile_elems // 128) * 128)
    else:
        per_buf_cap = min(block_budget // 8, 4 * 1024 * 1024)
        thw_budget = max(128, (per_buf_cap // (C * isz)) // 128 * 128)

    if HW <= thw_budget:
        thw = HW                      # single full-width tile (full dim is legal)
        needs_mask = False
    else:
        thw = thw_budget              # multiple of 128; ragged tail masked in-kernel
        needs_mask = (HW % thw) != 0
    n_hw = pl.cdiv(HW, thw)

    # Pass 1: squeeze + excite (pooling reduction + fused MLP epilogue).
    y = pl.pallas_call(
        functools.partial(_se_pool_mlp_kernel, hw=HW, thw=thw,
                          inv_hw=inv_hw, needs_mask=needs_mask),
        out_shape=jax.ShapeDtypeStruct((B, C, 1), jnp.float32),
        grid=(B, n_hw),
        in_specs=[
            pl.BlockSpec((1, C, thw), lambda b, m: (b, 0, m)),
            pl.BlockSpec((C, hidden), lambda b, m: (0, 0)),
            pl.BlockSpec((1, hidden), lambda b, m: (0, 0)),
            pl.BlockSpec((hidden, C), lambda b, m: (0, 0)),
            pl.BlockSpec((1, C), lambda b, m: (0, 0)),
        ],
        out_specs=pl.BlockSpec((1, C, 1), lambda b, m: (b, 0, 0)),
        scratch_shapes=[pltpu.VMEM((1, C, 128), jnp.float32)],
        compiler_params=pltpu.CompilerParams(
            dimension_semantics=("parallel", "arbitrary"),
            vmem_limit_bytes=vmem_limit),
    )(x, w1f, b1f, w2f, b2f)

    # Pass 2: per-channel rescale (fully parallel; OOB lanes of a ragged last
    # block are dropped on write by Pallas).
    out = pl.pallas_call(
        _se_scale_kernel,
        out_shape=jax.ShapeDtypeStruct((B, C, HW), in_dtype),
        grid=(B, n_hw),
        in_specs=[
            pl.BlockSpec((1, C, thw), lambda b, m: (b, 0, m)),
            pl.BlockSpec((1, C, 1), lambda b, m: (b, 0, 0)),
        ],
        out_specs=pl.BlockSpec((1, C, thw), lambda b, m: (b, 0, m)),
        compiler_params=pltpu.CompilerParams(
            dimension_semantics=("parallel", "parallel"),
            vmem_limit_bytes=vmem_limit),
    )(x, y)

    return out.reshape(B, C, H, W)


# ----------------------------------------------------------------------------
# Pure-JAX reference (mirrors the PyTorch SELayer forward)
# ----------------------------------------------------------------------------
def se_layer_ref(x, w1, b1, w2, b2):
    y = x.astype(jnp.float32).mean(axis=(2, 3))          # AdaptiveAvgPool2d(1)
    y = jnp.maximum(y @ w1 + b1, 0.0)                    # Linear + ReLU
    y = _sigmoid(y @ w2 + b2)                            # Linear + Sigmoid
    return (x.astype(jnp.float32) * y[:, :, None, None]).astype(x.dtype)


# ----------------------------------------------------------------------------
if __name__ == "__main__":
    # SELayer(channel=64, reduction=16) -> hidden = 4
    B, C, reduction = 2, 64, 16
    hidden = C // reduction

    key = jax.random.PRNGKey(0)
    kx1, kx2, k1, k2, k3, k4 = jax.random.split(key, 6)
    w1 = jax.random.normal(k1, (C, hidden), jnp.float32) / (C ** 0.5)
    b1 = 0.02 * jax.random.normal(k2, (hidden,), jnp.float32)
    w2 = jax.random.normal(k3, (hidden, C), jnp.float32) / (hidden ** 0.5)
    b2 = 0.02 * jax.random.normal(k4, (C,), jnp.float32)

    # 1) Default path: fully fused single pass (feature map fits VMEM).
    x1 = jax.random.normal(kx1, (B, C, 16, 16), jnp.float32)
    out1 = jax.block_until_ready(se_layer(x1, w1, b1, w2, b2))
    ref1 = se_layer_ref(x1, w1, b1, w2, b2)
    assert out1.shape == x1.shape and out1.dtype == x1.dtype
    assert bool(jnp.all(jnp.isfinite(out1)))
    assert bool(jnp.allclose(out1, ref1, rtol=1e-4, atol=1e-5)), \
        float(jnp.max(jnp.abs(out1 - ref1)))

    # 2) Two-pass tiled path, ragged HW (HW=240, thw=128): exercises multi-tile
    #    accumulation across grid steps + iota masking of the partial block.
    x2 = jax.random.normal(kx2, (B, C, 12, 20), jnp.float32)
    ref2 = se_layer_ref(x2, w1, b1, w2, b2)
    out2 = jax.block_until_ready(
        se_layer(x2, w1, b1, w2, b2, force_two_pass=True, max_tile_elems=128))
    assert bool(jnp.allclose(out2, ref2, rtol=1e-4, atol=1e-5)), \
        float(jnp.max(jnp.abs(out2 - ref2)))

    # 3) Two-pass path, single full-width tile (static tail-slice branch).
    out3 = jax.block_until_ready(
        se_layer(x2, w1, b1, w2, b2, force_two_pass=True))
    assert bool(jnp.allclose(out3, ref2, rtol=1e-4, atol=1e-5)), \
        float(jnp.max(jnp.abs(out3 - ref2)))

    print("KERNEL_OK")
</pallas_src>

<mosaic_0001>
module attributes {stable_mosaic.version = 11 : i64} {
  func.func @_se_fused_kernel(%arg0: i32, %arg1: memref<1x64x256xf32, #tpu.memory_space<vmem>>, %arg2: memref<64x4xf32, #tpu.memory_space<vmem>>, %arg3: memref<1x4xf32, #tpu.memory_space<vmem>>, %arg4: memref<4x64xf32, #tpu.memory_space<vmem>>, %arg5: memref<1x64xf32, #tpu.memory_space<vmem>>, %arg6: memref<1x64x256xf32, #tpu.memory_space<vmem>>, %arg7: memref<1x64x128xf32, #tpu.memory_space<vmem>>) attributes {dimension_semantics = [#tpu.dimension_semantics<parallel>], iteration_bounds = array<i64: 2>, scalar_prefetch = 0 : i64, scratch_operands = 1 : i64, tpu.core_type = #tpu.core_type<tc>, window_params = [{transform_indices = @transform_0, window_bounds = array<i64: 1, 64, 256>}, {pipeline_mode = #tpu.pipeline_mode<synchronous>, transform_indices = @transform_1, window_bounds = array<i64: 64, 4>}, {pipeline_mode = #tpu.pipeline_mode<synchronous>, transform_indices = @transform_2, window_bounds = array<i64: 1, 4>}, {pipeline_mode = #tpu.pipeline_mode<synchronous>, transform_indices = @transform_3, window_bounds = array<i64: 4, 64>}, {pipeline_mode = #tpu.pipeline_mode<synchronous>, transform_indices = @transform_4, window_bounds = array<i64: 1, 64>}, {transform_indices = @transform_5, window_bounds = array<i64: 1, 64, 256>}]} {
    %cst = arith.constant 0.000000e+00 : f32
    %0 = vector.broadcast %cst : f32 to vector<1x64x128xf32>
    %c0 = arith.constant 0 : index
    %c0_0 = arith.constant 0 : index
    %c0_1 = arith.constant 0 : index
    %1 = vector.load %arg7[%c0, %c0_0, %c0_1] : memref<1x64x128xf32, #tpu.memory_space<vmem>>, vector<1x64x128xf32>
    tpu.vector_store %arg7[%c0, %c0_0, %c0_1], %0 {strides = array<i32>} : memref<1x64x128xf32, #tpu.memory_space<vmem>>, vector<1x64x128xf32>,
    %c0_i32 = arith.constant 0 : i32
    %c128_i32 = arith.constant 128 : i32
    %2 = arith.muli %c0_i32, %c128_i32 : i32
    %3 = tpu.assume_multiple %2, 128 : i32
    %c0_2 = arith.constant 0 : index
    %c0_3 = arith.constant 0 : index
    %c0_4 = arith.constant 0 : index
    %4 = vector.load %arg7[%c0_2, %c0_3, %c0_4] : memref<1x64x128xf32, #tpu.memory_space<vmem>>, vector<1x64x128xf32>
    %c0_5 = arith.constant 0 : index
    %c0_6 = arith.constant 0 : index
    %5 = arith.index_cast %3 : i32 to index
    %6 = vector.load %arg1[%c0_5, %c0_6, %5] : memref<1x64x256xf32, #tpu.memory_space<vmem>>, vector<1x64x128xf32>
    %7 = arith.addf %4, %6 : vector<1x64x128xf32>
    %c0_7 = arith.constant 0 : index
    %c0_8 = arith.constant 0 : index
    %c0_9 = arith.constant 0 : index
    %8 = vector.load %arg7[%c0_7, %c0_8, %c0_9] : memref<1x64x128xf32, #tpu.memory_space<vmem>>, vector<1x64x128xf32>
    tpu.vector_store %arg7[%c0_7, %c0_8, %c0_9], %7 {strides = array<i32>} : memref<1x64x128xf32, #tpu.memory_space<vmem>>, vector<1x64x128xf32>,
    %c1_i32 = arith.constant 1 : i32
    %c128_i32_10 = arith.constant 128 : i32
    %9 = arith.muli %c1_i32, %c128_i32_10 : i32
    %10 = tpu.assume_multiple %9, 128 : i32
    %c0_11 = arith.constant 0 : index
    %c0_12 = arith.constant 0 : index
    %c0_13 = arith.constant 0 : index
    %11 = vector.load %arg7[%c0_11, %c0_12, %c0_13] : memref<1x64x128xf32, #tpu.memory_space<vmem>>, vector<1x64x128xf32>
    %c0_14 = arith.constant 0 : index
    %c0_15 = arith.constant 0 : index
    %12 = arith.index_cast %10 : i32 to index
    %13 = vector.load %arg1[%c0_14, %c0_15, %12] : memref<1x64x256xf32, #tpu.memory_space<vmem>>, vector<1x64x128xf32>
    %14 = arith.addf %11, %13 : vector<1x64x128xf32>
    %c0_16 = arith.constant 0 : index
    %c0_17 = arith.constant 0 : index
    %c0_18 = arith.constant 0 : index
    %15 = vector.load %arg7[%c0_16, %c0_17, %c0_18] : memref<1x64x128xf32, #tpu.memory_space<vmem>>, vector<1x64x128xf32>
    tpu.vector_store %arg7[%c0_16, %c0_17, %c0_18], %14 {strides = array<i32>} : memref<1x64x128xf32, #tpu.memory_space<vmem>>, vector<1x64x128xf32>,
    %c2_i32 = arith.constant 2 : i32
    %c0_19 = arith.constant 0 : index
    %c0_20 = arith.constant 0 : index
    %c0_21 = arith.constant 0 : index
    %16 = vector.load %arg7[%c0_19, %c0_20, %c0_21] : memref<1x64x128xf32, #tpu.memory_space<vmem>>, vector<1x64x128xf32>
    %cst_22 = arith.constant dense<0.000000e+00> : vector<1x64xf32>
    %17 = vector.multi_reduction <add>, %16, %cst_22 [2] : vector<1x64x128xf32> to vector<1x64xf32>
    %cst_23 = arith.constant 3.906250e-03 : f32
    %18 = vector.broadcast %cst_23 : f32 to vector<1x64xf32>
    %19 = arith.mulf %17, %18 : vector<1x64xf32>
    %c0_24 = arith.constant 0 : index
    %c0_25 = arith.constant 0 : index
    %20 = vector.load %arg2[%c0_24, %c0_25] : memref<64x4xf32, #tpu.memory_space<vmem>>, vector<64x4xf32>
    %cst_26 = arith.constant dense<0.000000e+00> : vector<1x4xf32>
    %21 = tpu.matmul %19, %20, %cst_26 {dimension_numbers = #tpu.dot_dimension_numbers<[1], [0], [0], [1], [0, 0, 1, 1], [], []>} : vector<1x64xf32>, vector<64x4xf32>, vector<1x4xf32> -> vector<1x4xf32>
    %c0_27 = arith.constant 0 : index
    %c0_28 = arith.constant 0 : index
    %22 = vector.load %arg3[%c0_27, %c0_28] : memref<1x4xf32, #tpu.memory_space<vmem>>, vector<1x4xf32>
    %23 = arith.addf %21, %22 : vector<1x4xf32>
    %cst_29 = arith.constant 0.000000e+00 : f32
    %24 = vector.broadcast %cst_29 : f32 to vector<1x4xf32>
    %25 = arith.maximumf %23, %24 : vector<1x4xf32>
    %c0_30 = arith.constant 0 : index
    %c0_31 = arith.constant 0 : index
    %26 = vector.load %arg4[%c0_30, %c0_31] : memref<4x64xf32, #tpu.memory_space<vmem>>, vector<4x64xf32>
    %cst_32 = arith.constant dense<0.000000e+00> : vector<1x64xf32>
    %27 = tpu.matmul %25, %26, %cst_32 {dimension_numbers = #tpu.dot_dimension_numbers<[1], [0], [0], [1], [0, 0, 1, 1], [], []>} : vector<1x4xf32>, vector<4x64xf32>, vector<1x64xf32> -> vector<1x64xf32>
    %c0_33 = arith.constant 0 : index
    %c0_34 = arith.constant 0 : index
    %28 = vector.load %arg5[%c0_33, %c0_34] : memref<1x64xf32, #tpu.memory_space<vmem>>, vector<1x64xf32>
    %29 = arith.addf %27, %28 : vector<1x64xf32>
    %cst_35 = arith.constant 0.000000e+00 : f32
    %30 = vector.broadcast %cst_35 : f32 to vector<1x64xf32>
    %31 = arith.subf %30, %29 : vector<1x64xf32>
    %32 = math.exp %31 : vector<1x64xf32>
    %cst_36 = arith.constant 1.000000e+00 : f32
    %33 = vector.broadcast %cst_36 : f32 to vector<1x64xf32>
    %34 = arith.addf %33, %32 : vector<1x64xf32>
    %cst_37 = arith.constant 1.000000e+00 : f32
    %35 = vector.broadcast %cst_37 : f32 to vector<1x64xf32>
    %36 = arith.divf %35, %34 : vector<1x64xf32>
    %c0_38 = arith.constant 0 : index
    %c0_39 = arith.constant 0 : index
    %c0_40 = arith.constant 0 : index
    %37 = vector.load %arg1[%c0_38, %c0_39, %c0_40] : memref<1x64x256xf32, #tpu.memory_space<vmem>>, vector<1x64x256xf32>
    %38 = vector.shape_cast %36 : vector<1x64xf32> to vector<1x64x1xf32>
    %39 = vector.broadcast %38 : vector<1x64x1xf32> to vector<1x64x256xf32>
    %40 = arith.mulf %37, %39 : vector<1x64x256xf32>
    %c0_41 = arith.constant 0 : index
    %c0_42 = arith.constant 0 : index
    %c0_43 = arith.constant 0 : index
    %41 = vector.load %arg6[%c0_41, %c0_42, %c0_43] : memref<1x64x256xf32, #tpu.memory_space<vmem>>, vector<1x64x256xf32>
    tpu.vector_store %arg6[%c0_41, %c0_42, %c0_43], %40 {strides = array<i32>} : memref<1x64x256xf32, #tpu.memory_space<vmem>>, vector<1x64x256xf32>,
    return
  }
  func.func @transform_0(%arg0: i32) -> (i32, i32, i32) {
    %c0_i32 = arith.constant 0 : i32
    %c0_i32_0 = arith.constant 0 : i32
    %c0_i32_1 = arith.constant 0 : i32
    return %arg0, %c0_i32, %c0_i32_0 : i32, i32, i32
  }
  func.func @transform_1(%arg0: i32) -> (i32, i32) {
    %c0_i32 = arith.constant 0 : i32
    %c0_i32_0 = arith.constant 0 : i32
    %c0_i32_1 = arith.constant 0 : i32
    return %c0_i32, %c0_i32_0 : i32, i32
  }
  func.func @transform_2(%arg0: i32) -> (i32, i32) {
    %c0_i32 = arith.constant 0 : i32
    %c0_i32_0 = arith.constant 0 : i32
    %c0_i32_1 = arith.constant 0 : i32
    return %c0_i32, %c0_i32_0 : i32, i32
  }
  func.func @transform_3(%arg0: i32) -> (i32, i32) {
    %c0_i32 = arith.constant 0 : i32
    %c0_i32_0 = arith.constant 0 : i32
    %c0_i32_1 = arith.constant 0 : i32
    return %c0_i32, %c0_i32_0 : i32, i32
  }
  func.func @transform_4(%arg0: i32) -> (i32, i32) {
    %c0_i32 = arith.constant 0 : i32
    %c0_i32_0 = arith.constant 0 : i32
    %c0_i32_1 = arith.constant 0 : i32
    return %c0_i32, %c0_i32_0 : i32, i32
  }
  func.func @transform_5(%arg0: i32) -> (i32, i32, i32) {
    %c0_i32 = arith.constant 0 : i32
    %c0_i32_0 = arith.constant 0 : i32
    %c0_i32_1 = arith.constant 0 : i32
    return %arg0, %c0_i32, %c0_i32_0 : i32, i32, i32
  }
}

</mosaic_0001>

<llo_original>
// kernel: se_layer.1
$region0: #{se_layer.1}
  #allocation0 [shape = 'u32[]', space=smem, size = 0x4, offset = 0x4, fixed_abs, tag = 'smem constant byte address 0x4 - core index']
  #allocation1 [shape = 'u32[144,128]{1,0:T(1,128)}', space=vmem, size = 0x12000, scoped, tag = 'internal scratch']
  #allocation2 [shape = 'f32[1,64,128]{2,1,0:T(8,128)}', space=vmem, size = 0x8000, scoped, tag = 'scratch operand']
  %s0 = inlined_call_operand.vmem [shape: f32[2,64,256], index: 0, kind: input, shape index: {}]
  %s1 = inlined_call_operand.vmem [shape: f32[64,4], index: 1, kind: input, shape index: {}]
  %s2 = inlined_call_operand.vmem [shape: f32[1,4], index: 2, kind: input, shape index: {}]
  %s3 = inlined_call_operand.vmem [shape: f32[4,64], index: 3, kind: input, shape index: {}]
  %s4 = inlined_call_operand.vmem [shape: f32[1,64], index: 4, kind: input, shape index: {}]
  %s5 = inlined_call_operand.vmem [shape: f32[2,64,256], index: 5, kind: output, shape index: {}]
  %s6 = sld [smem:[#allocation0]]
  $region53: #{se_layer.1} parent=0
    _
  %s8 = ssub.s32 1, %s6
  %s9 = scalar_select 0, %s8, %s6
  loop: start=0, step=1, limit=4
  $region2: #{se_layer.1} parent=0 // loop_pre_header
    _
  $region3: #{se_layer.1} parent=0 // loop_header
    %s11 = sphi 0, %s15
    %p12 = scmp.ge.s32.totalorder %s11, 4
    %s21 = sphi 0, %s23
    %s24 = sphi 0, %s21
    %s25 = sphi 0, %s24
    %s41 = sphi 0, %s25
    %s45 = sphi 0, %s45
    %s47 = sphi 0, %s45
    %s48 = sphi 0, %s47
    %s62 = sphi 0, %s48
    %s66 = sphi 0, %s66
    %s68 = sphi 0, %s66
    %s69 = sphi 0, %s68
    %s83 = sphi 0, %s69
    %s87 = sphi 0, %s87
    %s89 = sphi 0, %s87
    %s90 = sphi 0, %s89
    %s104 = sphi 0, %s90
    %s108 = sphi 0, %s108
    %s110 = sphi 0, %s108
    %s111 = sphi 0, %s110
    %s125 = sphi 0, %s111
    %s131 = sphi 0, %s133
    %s134 = sphi 0, %s131
    %s135 = sphi 0, %s134
    %s151 = sphi 0, %s135
  $region4: #{se_layer.1} parent=0 // loop_header_branch
    %14 = sbr.rel (%p12) target = $region8
  $region5: #{se_layer.1} parent=0 // loop_body
    %s16 = ssub.s32 %s11, 1
    %s17 = ssub.s32 %s11, 2
    %s18 = sadd.s32 %s11, 1
    %s19 = ssub.s32 %s11, %s18
    %p20 = scmp.eq.s32.totalorder %s19, 0
    %s22 = sadd.s32 %s21, 1
    %s23 = scalar_select %p20, %s21, %s22
    %p26 = pneg %p20
    %p27 = scmp.eq.s32.totalorder %s11, 1
    %p28 = por %p26, %p27
    %p29 = scmp.ne.s32.totalorder %s21, %s24
    %p30 = scmp.eq.s32.totalorder %s11, 0
    %p31 = por %p29, %p30
    %p32 = scmp.ne.s32.totalorder %s21, %s24
    %p33 = scmp.eq.s32.totalorder %s16, 1
    %p34 = por %p32, %p33
    %p35 = scmp.ne.s32.totalorder %s24, %s25
    %p36 = scmp.eq.s32.totalorder %s16, 0
    %p37 = por %p35, %p36
    %p38 = scmp.ne.s32.totalorder %s24, %s25
    %p39 = scmp.eq.s32.totalorder %s17, 1
    %p40 = por %p38, %p39
    %p42 = scmp.ne.s32.totalorder %s25, %s41
    %p43 = scmp.eq.s32.totalorder %s17, 0
    %p44 = por %p42, %p43
    %s46 = sadd.s32 %s45, 1
    %p49 = scmp.eq.s32.totalorder %s11, 1
    %p50 = scmp.ne.s32.totalorder %s45, %s47
    %p51 = scmp.eq.s32.totalorder %s11, 0
    %p52 = por %p50, %p51
    %p53 = scmp.ne.s32.totalorder %s45, %s47
    %p54 = scmp.eq.s32.totalorder %s16, 1
    %p55 = por %p53, %p54
    %p56 = scmp.ne.s32.totalorder %s47, %s48
    %p57 = scmp.eq.s32.totalorder %s16, 0
    %p58 = por %p56, %p57
    %p59 = scmp.ne.s32.totalorder %s47, %s48
    %p60 = scmp.eq.s32.totalorder %s17, 1
    %p61 = por %p59, %p60
    %p63 = scmp.ne.s32.totalorder %s48, %s62
    %p64 = scmp.eq.s32.totalorder %s17, 0
    %p65 = por %p63, %p64
    %s67 = sadd.s32 %s66, 1
    %p70 = scmp.eq.s32.totalorder %s11, 1
    %p71 = scmp.ne.s32.totalorder %s66, %s68
    %p72 = scmp.eq.s32.totalorder %s11, 0
    %p73 = por %p71, %p72
    %p74 = scmp.ne.s32.totalorder %s66, %s68
    %p75 = scmp.eq.s32.totalorder %s16, 1
    %p76 = por %p74, %p75
    %p77 = scmp.ne.s32.totalorder %s68, %s69
    %p78 = scmp.eq.s32.totalorder %s16, 0
    %p79 = por %p77, %p78
    %p80 = scmp.ne.s32.totalorder %s68, %s69
    %p81 = scmp.eq.s32.totalorder %s17, 1
    %p82 = por %p80, %p81
    %p84 = scmp.ne.s32.totalorder %s69, %s83
    %p85 = scmp.eq.s32.totalorder %s17, 0
    %p86 = por %p84, %p85
    %s88 = sadd.s32 %s87, 1
    %p91 = scmp.eq.s32.totalorder %s11, 1
    %p92 = scmp.ne.s32.totalorder %s87, %s89
    %p93 = scmp.eq.s32.totalorder %s11, 0
    %p94 = por %p92, %p93
    %p95 = scmp.ne.s32.totalorder %s87, %s89
    %p96 = scmp.eq.s32.totalorder %s16, 1
    %p97 = por %p95, %p96
    %p98 = scmp.ne.s32.totalorder %s89, %s90
    %p99 = scmp.eq.s32.totalorder %s16, 0
    %p100 = por %p98, %p99
    %p101 = scmp.ne.s32.totalorder %s89, %s90
    %p102 = scmp.eq.s32.totalorder %s17, 1
    %p103 = por %p101, %p102
    %p105 = scmp.ne.s32.totalorder %s90, %s104
    %p106 = scmp.eq.s32.totalorder %s17, 0
    %p107 = por %p105, %p106
    %s109 = sadd.s32 %s108, 1
    %p112 = scmp.eq.s32.totalorder %s11, 1
    %p113 = scmp.ne.s32.totalorder %s108, %s110
    %p114 = scmp.eq.s32.totalorder %s11, 0
    %p115 = por %p113, %p114
    %p116 = scmp.ne.s32.totalorder %s108, %s110
    %p117 = scmp.eq.s32.totalorder %s16, 1
    %p118 = por %p116, %p117
    %p119 = scmp.ne.s32.totalorder %s110, %s111
    %p120 = scmp.eq.s32.totalorder %s16, 0
    %p121 = por %p119, %p120
    %p122 = scmp.ne.s32.totalorder %s110, %s111
    %p123 = scmp.eq.s32.totalorder %s17, 1
    %p124 = por %p122, %p123
    %p126 = scmp.ne.s32.totalorder %s111, %s125
    %p127 = scmp.eq.s32.totalorder %s17, 0
    %p128 = por %p126, %p127
    %s129 = ssub.s32 %s11, %s18
    %p130 = scmp.eq.s32.totalorder %s129, 0
    %s132 = sadd.s32 %s131, 1
    %s133 = scalar_select %p130, %s131, %s132
    %p136 = pneg %p130
    %p137 = scmp.eq.s32.totalorder %s11, 1
    %p138 = por %p136, %p137
    %p139 = scmp.ne.s32.totalorder %s131, %s134
    %p140 = scmp.eq.s32.totalorder %s11, 0
    %p141 = por %p139, %p140
    %p142 = scmp.ne.s32.totalorder %s131, %s134
    %p143 = scmp.eq.s32.totalorder %s16, 1
    %p144 = por %p142, %p143
    %p145 = scmp.ne.s32.totalorder %s134, %s135
    %p146 = scmp.eq.s32.totalorder %s16, 0
    %p147 = por %p145, %p146
    %p148 = scmp.ne.s32.totalorder %s134, %s135
    %p149 = scmp.eq.s32.totalorder %s17, 1
    %p150 = por %p148, %p149
    %p152 = scmp.ne.s32.totalorder %s135, %s151
    %p153 = scmp.eq.s32.totalorder %s17, 0
    %p154 = por %p152, %p153
    %p155 = scmp.le.s32.totalorder 1, %s11
    %p156 = scmp.lt.s32.totalorder %s11, 3
    %p157 = pnand %p155, %p156
    %p158 = pneg %p157
    // Predicated region
    $region9: #{se_layer.1} parent=5 // pred_check
      _
    $region10: #{se_layer.1} parent=5 // pred_check_branch
      %160 = sbr.rel (%p157) target = $region12
    $region11: #{se_layer.1} parent=5 // pred_region
      %s161 = ssub.s32 %s11, 1
      // Predicated region
      $region13: #{se_layer.1} parent=11 // pred_check
        %p162 = pneg %p58
      $region14: #{se_layer.1} parent=11 // pred_check_branch
        %164 = sbr.rel (%p162) target = $region16
      $region15: #{se_layer.1} parent=11 // pred_region
        _
      $region16: #{se_layer.1} parent=11 // pred_fallthru
        _
      // Predicated region
      $region17: #{se_layer.1} parent=11 // pred_check
        %p165 = pneg %p79
      $region18: #{se_layer.1} parent=11 // pred_check_branch
        %167 = sbr.rel (%p165) target = $region20
      $region19: #{se_layer.1} parent=11 // pred_region
        _
      $region20: #{se_layer.1} parent=11 // pred_fallthru
        _
      // Predicated region
      $region21: #{se_layer.1} parent=11 // pred_check
        %p168 = pneg %p100
      $region22: #{se_layer.1} parent=11 // pred_check_branch
        %170 = sbr.rel (%p168) target = $region24
      $region23: #{se_layer.1} parent=11 // pred_region
        _
      $region24: #{se_layer.1} parent=11 // pred_fallthru
        _
      // Predicated region
      $region25: #{se_layer.1} parent=11 // pred_check
        %p171 = pneg %p121
      $region26: #{se_layer.1} parent=11 // pred_check_branch
        %173 = sbr.rel (%p171) target = $region28
      $region27: #{se_layer.1} parent=11 // pred_region
        _
      $region28: #{se_layer.1} parent=11 // pred_fallthru
        _
    $region12: #{se_layer.1} parent=5 // pred_fallthru
      _
    %p174 = scmp.lt.s32.totalorder %s11, 2
    // Predicated region
    $region29: #{se_layer.1} parent=5 // pred_check
      %p175 = pneg %p174
    $region30: #{se_layer.1} parent=5 // pred_check_branch
      %177 = sbr.rel (%p175) target = $region32
    $region31: #{se_layer.1} parent=5 // pred_region
      // Predicated region
      $region33: #{se_layer.1} parent=31 // pred_check
        %p178 = pneg %p31
      $region34: #{se_layer.1} parent=31 // pred_check_branch
        %180 = sbr.rel (%p178) target = $region36
      $region35: #{se_layer.1} parent=31 // pred_region
        %p181 = scmp.lt.s32.totalorder %s11, 1
        %s182 = scalar_select %p181, %s11, 1
        %s183 = smul.addr %s182, 16
        %s184 = smul.addr %s183, 8
        %s185 = scalar_lea.vmem %s0, %s184
      $region36: #{se_layer.1} parent=31 // pred_fallthru
        _
    $region32: #{se_layer.1} parent=5 // pred_fallthru
      _
    %p186 = scmp.le.s32.totalorder 1, %s11
    %p187 = scmp.lt.s32.totalorder %s11, 3
    %p188 = pnand %p186, %p187
    %p189 = pneg %p188
    // Predicated region
    $region37: #{se_layer.1} parent=5 // pred_check
      _
    $region38: #{se_layer.1} parent=5 // pred_check_branch
      %191 = sbr.rel (%p188) target = $region40
    $region39: #{se_layer.1} parent=5 // pred_region
      %s192 = ssub.s32 %s11, 1
      %p193 = scmp.lt.s32.totalorder %s16, 1
      %s194 = scalar_select %p193, %s16, 1
      %s195 = smul.addr %s194, 16
      %s196 = smul.addr %s195, 8
      %s197 = scalar_lea.vmem %s0, %s196
      %p198 = pneg %p37
      %p199 = pneg %p34
      %p200 = pneg %p58
      %p201 = pneg %p55
      %p202 = pneg %p79
      %p203 = pneg %p76
      %p204 = pneg %p100
      %p205 = pneg %p97
      %p206 = pneg %p121
      %p207 = pneg %p118
      %p208 = pneg %p147
      %p209 = pneg %p144
      %p210 = scmp.lt.s32.totalorder %s16, 1
      %s211 = scalar_select %p210, %s16, 1
      %s212 = smul.addr %s211, 16
      %s213 = smul.addr %s212, 8
      %s214 = scalar_lea.vmem %s5, %s213
      %p215 = scmp.lt.s32.totalorder %s16, 1
      %s216 = scalar_select %p215, %s16, 1
      %s217 = smul.addr %s216, 16
      %s218 = smul.addr %s217, 8
      %s219 = scalar_lea.vmem %s0, %s218
      %p220 = scmp.lt.s32.totalorder %s16, 1
      %s221 = scalar_select %p220, %s16, 1
      %s222 = smul.addr %s221, 16
      %s223 = smul.addr %s222, 8
      %s224 = scalar_lea.vmem %s5, %s223
      %225 = vst [vmem:[#allocation2] sm:$0xff] 0.0
      %226 = vst [vmem:[#allocation2 + $0x8] sm:$0xff] 0.0
      %227 = vst [vmem:[#allocation2 + $0x10] sm:$0xff] 0.0
      %228 = vst [vmem:[#allocation2 + $0x18] sm:$0xff] 0.0
      %229 = vst [vmem:[#allocation2 + $0x20] sm:$0xff] 0.0
      %230 = vst [vmem:[#allocation2 + $0x28] sm:$0xff] 0.0
      %231 = vst [vmem:[#allocation2 + $0x30] sm:$0xff] 0.0
      %232 = vst [vmem:[#allocation2 + $0x38] sm:$0xff] 0.0
      %v233 = vld [vmem:[#allocation2] sm:$0xff]
      %v234 = vld [vmem:[#allocation2 + $0x8] sm:$0xff]
      %v235 = vld [vmem:[#allocation2 + $0x10] sm:$0xff]
      %v236 = vld [vmem:[#allocation2 + $0x18] sm:$0xff]
      %v237 = vld [vmem:[#allocation2 + $0x20] sm:$0xff]
      %v238 = vld [vmem:[#allocation2 + $0x28] sm:$0xff]
      %v239 = vld [vmem:[#allocation2 + $0x30] sm:$0xff]
      %v240 = vld [vmem:[#allocation2 + $0x38] sm:$0xff]
      %v241 = vld [vmem:[%s219] sm:$0xff]
      %v242 = vld [vmem:[%s219 + $0x10] sm:$0xff]
      %v243 = vld [vmem:[%s219 + $0x20] sm:$0xff]
      %v244 = vld [vmem:[%s219 + $0x30] sm:$0xff]
      %v245 = vld [vmem:[%s219 + $0x40] sm:$0xff]
      %v246 = vld [vmem:[%s219 + $0x50] sm:$0xff]
      %v247 = vld [vmem:[%s219 + $0x60] sm:$0xff]
      %v248 = vld [vmem:[%s219 + $0x70] sm:$0xff]
      %v249 = vadd.f32 %v233, %v241
      %v250 = vadd.f32 %v234, %v242
      %v251 = vadd.f32 %v235, %v243
      %v252 = vadd.f32 %v236, %v244
      %v253 = vadd.f32 %v237, %v245
      %v254 = vadd.f32 %v238, %v246
      %v255 = vadd.f32 %v239, %v247
      %v256 = vadd.f32 %v240, %v248
      %257 = vst [vmem:[#allocation2] sm:$0xff] %v249
      %258 = vst [vmem:[#allocation2 + $0x8] sm:$0xff] %v250
      %259 = vst [vmem:[#allocation2 + $0x10] sm:$0xff] %v251
      %260 = vst [vmem:[#allocation2 + $0x18] sm:$0xff] %v252
      %261 = vst [vmem:[#allocation2 + $0x20] sm:$0xff] %v253
      %262 = vst [vmem:[#allocation2 + $0x28] sm:$0xff] %v254
      %263 = vst [vmem:[#allocation2 + $0x30] sm:$0xff] %v255
      %264 = vst [vmem:[#allocation2 + $0x38] sm:$0xff] %v256
      %v265 = vld [vmem:[#allocation2] sm:$0xff]
      %v266 = vld [vmem:[#allocation2 + $0x8] sm:$0xff]
      %v267 = vld [vmem:[#allocation2 + $0x10] sm:$0xff]
      %v268 = vld [vmem:[#allocation2 + $0x18] sm:$0xff]
      %v269 = vld [vmem:[#allocation2 + $0x20] sm:$0xff]
      %v270 = vld [vmem:[#allocation2 + $0x28] sm:$0xff]
      %v271 = vld [vmem:[#allocation2 + $0x30] sm:$0xff]
      %v272 = vld [vmem:[#allocation2 + $0x38] sm:$0xff]
      %s273 = scalar_lea.vmem %s219, 8
      %v274 = vld [vmem:[%s273] sm:$0xff]
      %v275 = vld [vmem:[%s273 + $0x10] sm:$0xff]
      %v276 = vld [vmem:[%s273 + $0x20] sm:$0xff]
      %v277 = vld [vmem:[%s273 + $0x30] sm:$0xff]
      %v278 = vld [vmem:[%s273 + $0x40] sm:$0xff]
      %v279 = vld [vmem:[%s273 + $0x50] sm:$0xff]
      %v280 = vld [vmem:[%s273 + $0x60] sm:$0xff]
      %v281 = vld [vmem:[%s273 + $0x70] sm:$0xff]
      %v282 = vadd.f32 %v265, %v274
      %v283 = vadd.f32 %v266, %v275
      %v284 = vadd.f32 %v267, %v276
      %v285 = vadd.f32 %v268, %v277
      %v286 = vadd.f32 %v269, %v278
      %v287 = vadd.f32 %v270, %v279
      %v288 = vadd.f32 %v271, %v280
      %v289 = vadd.f32 %v272, %v281
      %290 = vst [vmem:[#allocation2] sm:$0xff] %v282
      %291 = vst [vmem:[#allocation2 + $0x8] sm:$0xff] %v283
      %292 = vst [vmem:[#allocation2 + $0x10] sm:$0xff] %v284
      %293 = vst [vmem:[#allocation2 + $0x18] sm:$0xff] %v285
      %294 = vst [vmem:[#allocation2 + $0x20] sm:$0xff] %v286
      %295 = vst [vmem:[#allocation2 + $0x28] sm:$0xff] %v287
      %296 = vst [vmem:[#allocation2 + $0x30] sm:$0xff] %v288
      %297 = vst [vmem:[#allocation2 + $0x38] sm:$0xff] %v289
      %v298 = vld [vmem:[#allocation2] sm:$0xff]
      %v299 = vld [vmem:[#allocation2 + $0x8] sm:$0xff]
      %v300 = vld [vmem:[#allocation2 + $0x10] sm:$0xff]
      %v301 = vld [vmem:[#allocation2 + $0x18] sm:$0xff]
      %v302 = vld [vmem:[#allocation2 + $0x20] sm:$0xff]
      %v303 = vld [vmem:[#allocation2 + $0x28] sm:$0xff]
      %v304 = vld [vmem:[#allocation2 + $0x30] sm:$0xff]
      %v305 = vld [vmem:[#allocation2 + $0x38] sm:$0xff]
      %306 = vadd.xlane.f32.xlu0 %v298
      %v307 = vpop.xlane.xlu0 %306
      %308 = vadd.xlane.f32.xlu0 %v299
      %v309 = vpop.xlane.xlu0 %308
      %310 = vadd.xlane.f32.xlu0 %v300
      %v311 = vpop.xlane.xlu0 %310
      %312 = vadd.xlane.f32.xlu0 %v301
      %v313 = vpop.xlane.xlu0 %312
      %314 = vadd.xlane.f32.xlu0 %v302
      %v315 = vpop.xlane.xlu0 %314
      %316 = vadd.xlane.f32.xlu0 %v303
      %v317 = vpop.xlane.xlu0 %316
      %318 = vadd.xlane.f32.xlu0 %v304
      %v319 = vpop.xlane.xlu0 %318
      %320 = vadd.xlane.f32.xlu0 %v305
      %v321 = vpop.xlane.xlu0 %320
      %v322 = vmul.f32 %v307, 0.00390625
      %v323 = vmul.f32 %v309, 0.00390625
      %v324 = vmul.f32 %v311, 0.00390625
      %v325 = vmul.f32 %v313, 0.00390625
      %v326 = vmul.f32 %v315, 0.00390625
      %v327 = vmul.f32 %v317, 0.00390625
      %v328 = vmul.f32 %v319, 0.00390625
      %v329 = vmul.f32 %v321, 0.00390625
      %v330 = vld [vmem:[%s1] sm:$0xff]
      %v331 = vld [vmem:[%s1 + $0x8] sm:$0xff]
      %v332 = vld [vmem:[%s1 + $0x10] sm:$0xff]
      %v333 = vld [vmem:[%s1 + $0x18] sm:$0xff]
      %v334 = vld [vmem:[%s1 + $0x20] sm:$0xff]
      %v335 = vld [vmem:[%s1 + $0x28] sm:$0xff]
      %v336 = vld [vmem:[%s1 + $0x30] sm:$0xff]
      %v337 = vld [vmem:[%s1 + $0x38] sm:$0xff]
      %v338 = vld [vmem:[%s2] sm:$0x1]
      %v347 = vlaneseq
      %v348 = vand.u32 %v347, 127
      %v349 = vlaneseq
      %v350 = vshrl.u32 %v349, 7
      %v351 = vsub.s32 %v348, %v350
      %v352 = vrot.slane %v322, %v351
      %v353 = vadd.s32 %v348, 4294967288
      %v354 = vlaneseq
      %v355 = vshrl.u32 %v354, 7
      %v356 = vsub.s32 %v353, %v355
      %v357 = vrot.slane %v323, %v356
      %vm358 = vcmask 130112
      %v359 = vsel %vm358, %v357, %v352
      %v360 = vadd.s32 %v348, 4294967280
      %v361 = vlaneseq
      %v362 = vshrl.u32 %v361, 7
      %v363 = vsub.s32 %v360, %v362
      %v364 = vrot.slane %v324, %v363
      %vm365 = vcmask 195712
      %v366 = vsel %vm365, %v364, %v359
      %v367 = vadd.s32 %v348, 4294967272
      %v368 = vlaneseq
      %v369 = vshrl.u32 %v368, 7
      %v370 = vsub.s32 %v367, %v369
      %v371 = vrot.slane %v325, %v370
      %vm372 = vcmask 261312
      %v373 = vsel %vm372, %v371, %v366
      %v374 = vadd.s32 %v348, 4294967264
      %v375 = vlaneseq
      %v376 = vshrl.u32 %v375, 7
      %v377 = vsub.s32 %v374, %v376
      %v378 = vrot.slane %v326, %v377
      %vm379 = vcmask 326912
      %v380 = vsel %vm379, %v378, %v373
      %v381 = vadd.s32 %v348, 4294967256
      %v382 = vlaneseq
      %v383 = vshrl.u32 %v382, 7
      %v384 = vsub.s32 %v381, %v383
      %v385 = vrot.slane %v327, %v384
      %vm386 = vcmask 392512
      %v387 = vsel %vm386, %v385, %v380
      %v388 = vadd.s32 %v348, 4294967248
      %v389 = vlaneseq
      %v390 = vshrl.u32 %v389, 7
      %v391 = vsub.s32 %v388, %v390
      %v392 = vrot.slane %v328, %v391
      %vm393 = vcmask 458112
      %v394 = vsel %vm393, %v392, %v387
      %v395 = vadd.s32 %v348, 4294967240
      %v396 = vlaneseq
      %v397 = vshrl.u32 %v396, 7
      %v398 = vsub.s32 %v395, %v397
      %v399 = vrot.slane %v329, %v398
      %vm400 = vcmask 523712
      %v401 = vsel %vm400, %v399, %v394
      %vm402 = vcmask 523264
      %v403 = vsel %vm402, %v401, 0
      %405 = vmatprep.subr.mxu0 0.0
      %406 = vmatpush1.msra.mxu0 %v330
      %407 = vmatprep.subr.mxu0 0.0
      %408 = vmatpush1.msra.mxu0 %v331
      %409 = vmatprep.subr.mxu0 0.0
      %410 = vmatpush1.msra.mxu0 %v332
      %411 = vmatprep.subr.mxu0 0.0
      %412 = vmatpush1.msra.mxu0 %v333
      %413 = vmatprep.subr.mxu0 0.0
      %414 = vmatpush1.msra.mxu0 %v334
      %415 = vmatprep.subr.mxu0 0.0
      %416 = vmatpush1.msra.mxu0 %v335
      %417 = vmatprep.subr.mxu0 0.0
      %418 = vmatpush1.msra.mxu0 %v336
      %419 = vmatprep.subr.mxu0 0.0
      %420 = vmatpush1.msra.mxu0 %v337
      %421 = vmatprep.subr.mxu0 0.0
      %422 = vmatpush1.msra.mxu0 0.0
      %423 = vmatprep.subr.mxu0 0.0
      %424 = vmatpush1.msra.mxu0 0.0
      %425 = vmatprep.subr.mxu0 0.0
      %426 = vmatpush1.msra.mxu0 0.0
      %427 = vmatprep.subr.mxu0 0.0
      %428 = vmatpush1.msra.mxu0 0.0
      %429 = vmatprep.subr.mxu0 0.0
      %430 = vmatpush1.msra.mxu0 0.0
      %431 = vmatprep.subr.mxu0 0.0
      %432 = vmatpush1.msra.mxu0 0.0
      %433 = vmatprep.subr.mxu0 0.0
      %434 = vmatpush1.msra.mxu0 0.0
      %435 = vmatprep.subr.mxu0 0.0
      %436 = vmatpush1.msra.mxu0 0.0
      %437 = vmatprep.subr.mxu0 0.0
      %438 = vmatpush1.msra.mxu0 0.0
      %439 = vmatprep.subr.mxu0 0.0
      %440 = vmatpush1.msra.mxu0 0.0
      %441 = vmatprep.subr.mxu0 0.0
      %442 = vmatpush1.msra.mxu0 0.0
      %443 = vmatprep.subr.mxu0 0.0
      %444 = vmatpush1.msra.mxu0 0.0
      %445 = vmatprep.subr.mxu0 0.0
      %446 = vmatpush1.msra.mxu0 0.0
      %447 = vmatprep.subr.mxu0 0.0
      %448 = vmatpush1.msra.mxu0 0.0
      %449 = vmatprep.subr.mxu0 0.0
      %450 = vmatpush1.msra.mxu0 0.0
      %451 = vmatprep.subr.mxu0 0.0
      %452 = vmatpush1.msra.mxu0 0.0
      %453 = vmatprep.subr.mxu0 0.0
      %454 = vmatpush1.msra.mxu0 0.0
      %455 = vmatprep.subr.mxu0 0.0
      %456 = vmatpush1.msra.mxu0 0.0
      %457 = vmatprep.subr.mxu0 0.0
      %458 = vmatpush1.msra.mxu0 0.0
      %459 = vmatprep.subr.mxu0 0.0
      %460 = vmatpush1.msra.mxu0 0.0
      %461 = vmatprep.subr.mxu0 0.0
      %462 = vmatpush1.msra.mxu0 0.0
      %463 = vmatprep.subr.mxu0 0.0
      %464 = vmatpush1.msra.mxu0 0.0
      %465 = vmatprep.subr.mxu0 0.0
      %466 = vmatpush1.msra.mxu0 0.0
      %467 = vmatprep.subr.mxu0 0.0
      %468 = vmatpush1.msra.mxu0 0.0
      %469 = vmatprep.mubr.f32.mxu0 0.0
      %470 = vmatmul.mubr.f32.gmra.mrb[0].mxu0 %v403
      %v471 = vpop.f32.mrb[0].mxu0
      %v472 = vadd.f32 %v338, %v471
      %v473 = vpop.f32.mrb[0].mxu0
      %474 = vdwg.mxu0
      %v475 = vmax.f32 %v472, 0.0
      %v476 = vld [vmem:[%s3] sm:$0xf]
      %v477 = vld [vmem:[%s4] sm:$0x1]
      %vm478 = vcmask 31744
      %v480 = vsel %vm478, %v475, 0
      %vm482 = vcmask 1043456
      %v484 = vsel %vm482, %v476, 0
      %486 = vmatprep.subr.mxu0 0.0
      %487 = vmatpush1.msra.mxu0 %v484
      %488 = vmatprep.subr.mxu0 0.0
      %489 = vmatpush1.msra.mxu0 0.0
      %490 = vmatprep.subr.mxu0 0.0
      %491 = vmatpush1.msra.mxu0 0.0
      %492 = vmatprep.subr.mxu0 0.0
      %493 = vmatpush1.msra.mxu0 0.0
      %494 = vmatprep.subr.mxu0 0.0
      %495 = vmatpush1.msra.mxu0 0.0
      %496 = vmatprep.subr.mxu0 0.0
      %497 = vmatpush1.msra.mxu0 0.0
      %498 = vmatprep.subr.mxu0 0.0
      %499 = vmatpush1.msra.mxu0 0.0
      %500 = vmatprep.subr.mxu0 0.0
      %501 = vmatpush1.msra.mxu0 0.0
      %502 = vmatprep.subr.mxu0 0.0
      %503 = vmatpush1.msra.mxu0 0.0
      %504 = vmatprep.subr.mxu0 0.0
      %505 = vmatpush1.msra.mxu0 0.0
      %506 = vmatprep.subr.mxu0 0.0
      %507 = vmatpush1.msra.mxu0 0.0
      %508 = vmatprep.subr.mxu0 0.0
      %509 = vmatpush1.msra.mxu0 0.0
      %510 = vmatprep.subr.mxu0 0.0
      %511 = vmatpush1.msra.mxu0 0.0
      %512 = vmatprep.subr.mxu0 0.0
      %513 = vmatpush1.msra.mxu0 0.0
      %514 = vmatprep.subr.mxu0 0.0
      %515 = vmatpush1.msra.mxu0 0.0
      %516 = vmatprep.subr.mxu0 0.0
      %517 = vmatpush1.msra.mxu0 0.0
      %518 = vmatprep.subr.mxu0 0.0
      %519 = vmatpush1.msra.mxu0 0.0
      %520 = vmatprep.subr.mxu0 0.0
      %521 = vmatpush1.msra.mxu0 0.0
      %522 = vmatprep.subr.mxu0 0.0
      %523 = vmatpush1.msra.mxu0 0.0
      %524 = vmatprep.subr.mxu0 0.0
      %525 = vmatpush1.msra.mxu0 0.0
      %526 = vmatprep.subr.mxu0 0.0
      %527 = vmatpush1.msra.mxu0 0.0
      %528 = vmatprep.subr.mxu0 0.0
      %529 = vmatpush1.msra.mxu0 0.0
      %530 = vmatprep.subr.mxu0 0.0
      %531 = vmatpush1.msra.mxu0 0.0
      %532 = vmatprep.subr.mxu0 0.0
      %533 = vmatpush1.msra.mxu0 0.0
      %534 = vmatprep.subr.mxu0 0.0
      %535 = vmatpush1.msra.mxu0 0.0
      %536 = vmatprep.subr.mxu0 0.0
      %537 = vmatpush1.msra.mxu0 0.0
      %538 = vmatprep.subr.mxu0 0.0
      %539 = vmatpush1.msra.mxu0 0.0
      %540 = vmatprep.subr.mxu0 0.0
      %541 = vmatpush1.msra.mxu0 0.0
      %542 = vmatprep.subr.mxu0 0.0
      %543 = vmatpush1.msra.mxu0 0.0
      %544 = vmatprep.subr.mxu0 0.0
      %545 = vmatpush1.msra.mxu0 0.0
      %546 = vmatprep.subr.mxu0 0.0
      %547 = vmatpush1.msra.mxu0 0.0
      %548 = vmatprep.subr.mxu0 0.0
      %549 = vmatpush1.msra.mxu0 0.0
      %550 = vmatprep.mubr.f32.mxu0 0.0
      %551 = vmatmul.mubr.f32.gmra.mrb[0].mxu0 %v480
      %v552 = vpop.f32.mrb[0].mxu0
      %v553 = vadd.f32 %v477, %v552
      %v554 = vpop.f32.mrb[0].mxu0
      %555 = vdwg.mxu0
      %v556 = vsub.f32 0.0, %v553
      %v557 = vmul.f32 %v556, 1.442695
      %v558 = vpow.pop %v557
      %v559 = vadd.f32 %v558, 1.0
      %v560 = vrcp.pop %v559
      %v561 = vmul.f32 1.0, %v560
      %v562 = vld [vmem:[%s219] sm:$0xff]
      %v563 = vld [vmem:[%s219 + $0x8] sm:$0xff]
      %v564 = vld [vmem:[%s219 + $0x10] sm:$0xff]
      %v565 = vld [vmem:[%s219 + $0x18] sm:$0xff]
      %v566 = vld [vmem:[%s219 + $0x20] sm:$0xff]
      %v567 = vld [vmem:[%s219 + $0x28] sm:$0xff]
      %v568 = vld [vmem:[%s219 + $0x30] sm:$0xff]
      %v569 = vld [vmem:[%s219 + $0x38] sm:$0xff]
      %v570 = vld [vmem:[%s219 + $0x40] sm:$0xff]
      %v571 = vld [vmem:[%s219 + $0x48] sm:$0xff]
      %v572 = vld [vmem:[%s219 + $0x50] sm:$0xff]
      %v573 = vld [vmem:[%s219 + $0x58] sm:$0xff]
      %v574 = vld [vmem:[%s219 + $0x60] sm:$0xff]
      %v575 = vld [vmem:[%s219 + $0x68] sm:$0xff]
      %v576 = vld [vmem:[%s219 + $0x70] sm:$0xff]
      %v577 = vld [vmem:[%s219 + $0x78] sm:$0xff]
      %v578 = vlaneseq
      %v579 = vshrl.u32 %v578, 7
      %v580 = vsub.s32 0, %v579
      %v581 = vrot.slane %v561, %v580
      %583 = vbcast.lane.b32.xlu0 %v581, 256
      %v584 = vpop.permute.xlu0 %583
      %s586 = sor.u32 256, 8
      %587 = vbcast.lane.b32.xlu0 %v581, %s586
      %v588 = vpop.permute.xlu0 %587
      %s590 = sor.u32 256, 16
      %591 = vbcast.lane.b32.xlu0 %v581, %s590
      %v592 = vpop.permute.xlu0 %591
      %s594 = sor.u32 256, 24
      %595 = vbcast.lane.b32.xlu0 %v581, %s594
      %v596 = vpop.permute.xlu0 %595
      %s598 = sor.u32 256, 32
      %599 = vbcast.lane.b32.xlu0 %v581, %s598
      %v600 = vpop.permute.xlu0 %599
      %s602 = sor.u32 256, 40
      %603 = vbcast.lane.b32.xlu0 %v581, %s602
      %v604 = vpop.permute.xlu0 %603
      %s606 = sor.u32 256, 48
      %607 = vbcast.lane.b32.xlu0 %v581, %s606
      %v608 = vpop.permute.xlu0 %607
      %s610 = sor.u32 256, 56
      %611 = vbcast.lane.b32.xlu0 %v581, %s610
      %v612 = vpop.permute.xlu0 %611
      %v613 = vmul.f32 %v562, %v584
      %v614 = vmul.f32 %v563, %v584
      %v615 = vmul.f32 %v564, %v588
      %v616 = vmul.f32 %v565, %v588
      %v617 = vmul.f32 %v566, %v592
      %v618 = vmul.f32 %v567, %v592
      %v619 = vmul.f32 %v568, %v596
      %v620 = vmul.f32 %v569, %v596
      %v621 = vmul.f32 %v570, %v600
      %v622 = vmul.f32 %v571, %v600
      %v623 = vmul.f32 %v572, %v604
      %v624 = vmul.f32 %v573, %v604
      %v625 = vmul.f32 %v574, %v608
      %v626 = vmul.f32 %v575, %v608
      %v627 = vmul.f32 %v576, %v612
      %v628 = vmul.f32 %v577, %v612
      %629 = vst [vmem:[%s224] sm:$0xff] %v613
      %630 = vst [vmem:[%s224 + $0x8] sm:$0xff] %v614
      %631 = vst [vmem:[%s224 + $0x10] sm:$0xff] %v615
      %632 = vst [vmem:[%s224 + $0x18] sm:$0xff] %v616
      %633 = vst [vmem:[%s224 + $0x20] sm:$0xff] %v617
      %634 = vst [vmem:[%s224 + $0x28] sm:$0xff] %v618
      %635 = vst [vmem:[%s224 + $0x30] sm:$0xff] %v619
      %636 = vst [vmem:[%s224 + $0x38] sm:$0xff] %v620
      %637 = vst [vmem:[%s224 + $0x40] sm:$0xff] %v621
      %638 = vst [vmem:[%s224 + $0x48] sm:$0xff] %v622
      %639 = vst [vmem:[%s224 + $0x50] sm:$0xff] %v623
      %640 = vst [vmem:[%s224 + $0x58] sm:$0xff] %v624
      %641 = vst [vmem:[%s224 + $0x60] sm:$0xff] %v625
      %642 = vst [vmem:[%s224 + $0x68] sm:$0xff] %v626
      %643 = vst [vmem:[%s224 + $0x70] sm:$0xff] %v627
      %644 = vst [vmem:[%s224 + $0x78] sm:$0xff] %v628
      %p645 = scmp.lt.s32.totalorder %s16, 1
      %s646 = scalar_select %p645, %s16, 1
      %s647 = smul.addr %s646, 16
      %s648 = smul.addr %s647, 8
      %s649 = scalar_lea.vmem %s5, %s648
      // Predicated region
      $region41: #{se_layer.1} parent=39 // pred_check
        %p650 = pneg %p144
      $region42: #{se_layer.1} parent=39 // pred_check_branch
        %652 = sbr.rel (%p650) target = $region44
      $region43: #{se_layer.1} parent=39 // pred_region
        _
      $region44: #{se_layer.1} parent=39 // pred_fallthru
        _
    $region40: #{se_layer.1} parent=5 // pred_fallthru
      _
    %p653 = scmp.le.s32.totalorder 2, %s11
    // Predicated region
    $region45: #{se_layer.1} parent=5 // pred_check
      %p654 = pneg %p653
    $region46: #{se_layer.1} parent=5 // pred_check_branch
      %656 = sbr.rel (%p654) target = $region48
    $region47: #{se_layer.1} parent=5 // pred_region
      %s657 = ssub.s32 %s11, 2
      // Predicated region
      $region49: #{se_layer.1} parent=47 // pred_check
        %p658 = pneg %p150
      $region50: #{se_layer.1} parent=47 // pred_check_branch
        %660 = sbr.rel (%p658) target = $region52
      $region51: #{se_layer.1} parent=47 // pred_region
        %p661 = scmp.lt.s32.totalorder %s17, 1
        %s662 = scalar_select %p661, %s17, 1
        %s663 = smul.addr %s662, 16
        %s664 = smul.addr %s663, 8
        %s665 = scalar_lea.vmem %s5, %s664
      $region52: #{se_layer.1} parent=47 // pred_fallthru
        _
    $region48: #{se_layer.1} parent=5 // pred_fallthru
      _
  $region6: #{se_layer.1} parent=0 // loop_footer
    %s15 = sadd.s32 1, %s11
  $region7: #{se_layer.1} parent=0 // loop_footer_branch
    %10 = sbr.rel target = $region3
  $region8: #{se_layer.1} parent=0 // loop_exit
    _

</llo_original>
